<compile_context>
chip_gen: v7x
topology: tpu7x:2x2x1
jax: 0.10.0
libtpu: 0.0.40
codegen_flags: <defaults>
</compile_context>

<pallas_src>
import jax
import jax.numpy as jnp
from jax.experimental import pallas as pl
from jax.experimental.pallas import tpu as pltpu


def regressor_kernel(x_ref, w1_ref, b1_ref, w2_ref, b2_ref, o_ref):
    # linear1 on the MXU: (TB, D) @ (D, H) -> (TB, H), f32 accumulate.
    h = jnp.dot(x_ref[...], w1_ref[...], preferred_element_type=jnp.float32)
    # bias + ReLU on the VPU.
    h = jnp.maximum(h + b1_ref[...], 0.0)
    # linear2 (N=1): VPU multiply + lane reduction instead of a wasteful
    # 1-column MXU matmul. w2_ref is a (1, H) row; b2 is a scalar in SMEM.
    y = jnp.sum(h * w2_ref[...], axis=-1, keepdims=True) + b2_ref[0]
    o_ref[...] = y.astype(o_ref.dtype)


def regressor_forward(x, w1, b1, w2_row, b2, *, block_b=1024):
    """x: (B, D); w1: (D, H); b1: (1, H); w2_row: (1, H); b2: (1,) -> (B, 1)."""
    B, D = x.shape
    H = w1.shape[1]

    # Tile size: multiple of 8 (f32 sublane), capped to the (rounded-up) batch.
    TB = min(block_b, ((B + 7) // 8) * 8)
    TB = ((TB + 7) // 8) * 8

    # Pad the batch to a multiple of TB so every grid step sees a full tile.
    Bp = ((B + TB - 1) // TB) * TB
    if Bp != B:
        x = jnp.pad(x, ((0, Bp - B), (0, 0)))

    grid = (Bp // TB,)

    out = pl.pallas_call(
        regressor_kernel,
        out_shape=jax.ShapeDtypeStruct((Bp, 1), jnp.float32),
        grid=grid,
        in_specs=[
            pl.BlockSpec((TB, D), lambda i: (i, 0)),            # x: streamed
            pl.BlockSpec((D, H), lambda i: (0, 0)),             # w1: resident
            pl.BlockSpec((1, H), lambda i: (0, 0)),             # b1: resident
            pl.BlockSpec((1, H), lambda i: (0, 0)),             # w2 row: resident
            pl.BlockSpec(memory_space=pltpu.SMEM),              # b2: scalar in SMEM
        ],
        # NOTE: (TB, 1) writeback is a masked store, but output bytes are only
        # 1/D of the streamed x bytes, so it stays negligible at large TB.
        out_specs=pl.BlockSpec((TB, 1), lambda i: (i, 0)),
        compiler_params=pltpu.CompilerParams(
            dimension_semantics=("parallel",)),
    )(x, w1, b1, w2_row, b2)

    return out[:B]


def init_params(key, input_dim):
    """Deterministic init mimicking PyTorch nn.Linear default (U[-1/sqrt(fan_in), +])."""
    hidden = input_dim // 2
    k1, k2, k3, k4 = jax.random.split(key, 4)
    bound1 = 1.0 / jnp.sqrt(input_dim)
    bound2 = 1.0 / jnp.sqrt(hidden)
    w1 = jax.random.uniform(k1, (input_dim, hidden), jnp.float32, -bound1, bound1)
    b1 = jax.random.uniform(k2, (1, hidden), jnp.float32, -bound1, bound1)
    # Second layer weight stored as a (1, H) row (used via VPU reduction).
    w2_row = jax.random.uniform(k3, (1, hidden), jnp.float32, -bound2, bound2)
    b2 = jax.random.uniform(k4, (1,), jnp.float32, -bound2, bound2)
    return w1, b1, w2_row, b2


if __name__ == "__main__":
    key = jax.random.PRNGKey(0)
    kx, kp = jax.random.split(key)

    batch = 1037          # not a multiple of the tile: exercises padding + grid
    input_dim = 32        # hidden = 16, output = 1

    x = jax.random.normal(kx, (batch, input_dim), jnp.float32)
    w1, b1, w2_row, b2 = init_params(kp, input_dim)

    out = regressor_forward(x, w1, b1, w2_row, b2, block_b=512)
    out = jax.block_until_ready(out)

    # Pure-JAX reference check
    ref = jnp.maximum(x @ w1 + b1, 0.0) @ w2_row.T + b2[0]
    assert out.shape == (batch, 1)
    assert jnp.allclose(out, ref, atol=1e-4, rtol=1e-4)

    print("KERNEL_OK")
</pallas_src>

<mosaic_0001>
module attributes {stable_mosaic.version = 11 : i64} {
  func.func @regressor_kernel(%arg0: i32, %arg1: memref<512x32xf32, #tpu.memory_space<vmem>>, %arg2: memref<32x16xf32, #tpu.memory_space<vmem>>, %arg3: memref<1x16xf32, #tpu.memory_space<vmem>>, %arg4: memref<1x16xf32, #tpu.memory_space<vmem>>, %arg5: memref<1xf32, #tpu.memory_space<smem>>, %arg6: memref<512x1xf32, #tpu.memory_space<vmem>>) attributes {dimension_semantics = [#tpu.dimension_semantics<parallel>], iteration_bounds = array<i64: 3>, scalar_prefetch = 0 : i64, scratch_operands = 0 : i64, tpu.core_type = #tpu.core_type<tc>, window_params = [{transform_indices = @transform_0, window_bounds = array<i64: 512, 32>}, {pipeline_mode = #tpu.pipeline_mode<synchronous>, transform_indices = @transform_1, window_bounds = array<i64: 32, 16>}, {pipeline_mode = #tpu.pipeline_mode<synchronous>, transform_indices = @transform_2, window_bounds = array<i64: 1, 16>}, {pipeline_mode = #tpu.pipeline_mode<synchronous>, transform_indices = @transform_3, window_bounds = array<i64: 1, 16>}, {transform_indices = @transform_4, window_bounds = array<i64: 1>}, {transform_indices = @transform_5, window_bounds = array<i64: 512, 1>}]} {
    %c0 = arith.constant 0 : index
    %c0_0 = arith.constant 0 : index
    %0 = vector.load %arg1[%c0, %c0_0] : memref<512x32xf32, #tpu.memory_space<vmem>>, vector<512x32xf32>
    %c0_1 = arith.constant 0 : index
    %c0_2 = arith.constant 0 : index
    %1 = vector.load %arg2[%c0_1, %c0_2] : memref<32x16xf32, #tpu.memory_space<vmem>>, vector<32x16xf32>
    %cst = arith.constant dense<0.000000e+00> : vector<512x16xf32>
    %2 = tpu.matmul %0, %1, %cst {dimension_numbers = #tpu.dot_dimension_numbers<[1], [0], [0], [1], [0, 0, 1, 1], [], []>} : vector<512x32xf32>, vector<32x16xf32>, vector<512x16xf32> -> vector<512x16xf32>
    %c0_3 = arith.constant 0 : index
    %c0_4 = arith.constant 0 : index
    %3 = vector.load %arg3[%c0_3, %c0_4] : memref<1x16xf32, #tpu.memory_space<vmem>>, vector<1x16xf32>
    %4 = vector.broadcast %3 : vector<1x16xf32> to vector<512x16xf32>
    %5 = arith.addf %2, %4 : vector<512x16xf32>
    %cst_5 = arith.constant 0.000000e+00 : f32
    %6 = vector.broadcast %cst_5 : f32 to vector<512x16xf32>
    %7 = arith.maximumf %5, %6 : vector<512x16xf32>
    %c0_6 = arith.constant 0 : index
    %c0_7 = arith.constant 0 : index
    %8 = vector.load %arg4[%c0_6, %c0_7] : memref<1x16xf32, #tpu.memory_space<vmem>>, vector<1x16xf32>
    %9 = vector.broadcast %8 : vector<1x16xf32> to vector<512x16xf32>
    %10 = arith.mulf %7, %9 : vector<512x16xf32>
    %cst_8 = arith.constant dense<0.000000e+00> : vector<512xf32>
    %11 = vector.multi_reduction <add>, %10, %cst_8 [1] : vector<512x16xf32> to vector<512xf32>
    %12 = vector.shape_cast %11 : vector<512xf32> to vector<512x1xf32>
    %c0_9 = arith.constant 0 : index
    %13 = memref.load %arg5[%c0_9] : memref<1xf32, #tpu.memory_space<smem>>
    %14 = vector.broadcast %13 : f32 to vector<512x1xf32>
    %15 = arith.addf %12, %14 : vector<512x1xf32>
    %c0_10 = arith.constant 0 : index
    %c0_11 = arith.constant 0 : index
    %16 = vector.load %arg6[%c0_10, %c0_11] : memref<512x1xf32, #tpu.memory_space<vmem>>, vector<512x1xf32>
    tpu.vector_store %arg6[%c0_10, %c0_11], %15 {strides = array<i32>} : memref<512x1xf32, #tpu.memory_space<vmem>>, vector<512x1xf32>,
    return
  }
  func.func @transform_0(%arg0: i32) -> (i32, i32) {
    %c0_i32 = arith.constant 0 : i32
    %c0_i32_0 = arith.constant 0 : i32
    return %arg0, %c0_i32 : i32, i32
  }
  func.func @transform_1(%arg0: i32) -> (i32, i32) {
    %c0_i32 = arith.constant 0 : i32
    %c0_i32_0 = arith.constant 0 : i32
    %c0_i32_1 = arith.constant 0 : i32
    return %c0_i32, %c0_i32_0 : i32, i32
  }
  func.func @transform_2(%arg0: i32) -> (i32, i32) {
    %c0_i32 = arith.constant 0 : i32
    %c0_i32_0 = arith.constant 0 : i32
    %c0_i32_1 = arith.constant 0 : i32
    return %c0_i32, %c0_i32_0 : i32, i32
  }
  func.func @transform_3(%arg0: i32) -> (i32, i32) {
    %c0_i32 = arith.constant 0 : i32
    %c0_i32_0 = arith.constant 0 : i32
    %c0_i32_1 = arith.constant 0 : i32
    return %c0_i32, %c0_i32_0 : i32, i32
  }
  func.func @transform_4(%arg0: i32) -> i32 {
    %c0_i32 = arith.constant 0 : i32
    %c0_i32_0 = arith.constant 0 : i32
    return %c0_i32 : i32
  }
  func.func @transform_5(%arg0: i32) -> (i32, i32) {
    %c0_i32 = arith.constant 0 : i32
    %c0_i32_0 = arith.constant 0 : i32
    return %arg0, %c0_i32 : i32, i32
  }
}

</mosaic_0001>

<llo_original>
// kernel: tpu_custom_call.1
$region0: #{tpu_custom_call.1}
  #allocation0 [shape = 'u32[]', space=smem, size = 0x4, offset = 0x4, fixed_abs, tag = 'smem constant byte address 0x4 - core index']
  #allocation1 [shape = 'u32[144,128]{1,0:T(1,128)}', space=vmem, size = 0x12000, scoped, tag = 'internal scratch']
  #allocation2 [shape = 'f32[1]{0:T(128)S(6)}', space=smem, size = 0x200, scoped, tag = 'scoped memory for tpu_custom_call.1']
  %s0 = inlined_call_operand.vmem [shape: f32[1536,32], index: 0, kind: input, shape index: {}]
  %s1 = inlined_call_operand.vmem [shape: f32[32,16], index: 1, kind: input, shape index: {}]
  %s2 = inlined_call_operand.vmem [shape: f32[1,16], index: 2, kind: input, shape index: {}]
  %s3 = inlined_call_operand.vmem [shape: f32[1,16], index: 3, kind: input, shape index: {}]
  %s4 = inlined_call_operand.<no memory space> [shape: f32[1], index: 4, kind: input, shape index: {}]
  %s5 = inlined_call_operand.vmem [shape: f32[1536,1], index: 5, kind: output, shape index: {}]
  %s6 = sld [smem:[#allocation0]]
  $region53: #{tpu_custom_call.1} parent=0
    _
  %s8 = ssub.s32 1, %s6
  %s9 = scalar_select 0, %s8, %s6
  %10 = sst [smem:[#allocation2]] %s4
  loop: start=0, step=1, limit=5
  $region2: #{tpu_custom_call.1} parent=0 // loop_pre_header
    _
  $region3: #{tpu_custom_call.1} parent=0 // loop_header
    %s12 = sphi 0, %s16
    %p13 = scmp.ge.s32.totalorder %s12, 5
    %s22 = sphi 0, %s24
    %s25 = sphi 0, %s22
    %s26 = sphi 0, %s25
    %s42 = sphi 0, %s26
    %s46 = sphi 0, %s46
    %s48 = sphi 0, %s46
    %s49 = sphi 0, %s48
    %s63 = sphi 0, %s49
    %s67 = sphi 0, %s67
    %s69 = sphi 0, %s67
    %s70 = sphi 0, %s69
    %s84 = sphi 0, %s70
    %s88 = sphi 0, %s88
    %s90 = sphi 0, %s88
    %s91 = sphi 0, %s90
    %s105 = sphi 0, %s91
    %s109 = sphi 0, %s109
    %s111 = sphi 0, %s109
    %s112 = sphi 0, %s111
    %s126 = sphi 0, %s112
    %s132 = sphi 0, %s134
    %s135 = sphi 0, %s132
    %s136 = sphi 0, %s135
    %s152 = sphi 0, %s136
  $region4: #{tpu_custom_call.1} parent=0 // loop_header_branch
    %15 = sbr.rel (%p13) target = $region8
  $region5: #{tpu_custom_call.1} parent=0 // loop_body
    %s17 = ssub.s32 %s12, 1
    %s18 = ssub.s32 %s12, 2
    %s19 = sadd.s32 %s12, 1
    %s20 = ssub.s32 %s12, %s19
    %p21 = scmp.eq.s32.totalorder %s20, 0
    %s23 = sadd.s32 %s22, 1
    %s24 = scalar_select %p21, %s22, %s23
    %p27 = pneg %p21
    %p28 = scmp.eq.s32.totalorder %s12, 2
    %p29 = por %p27, %p28
    %p30 = scmp.ne.s32.totalorder %s22, %s25
    %p31 = scmp.eq.s32.totalorder %s12, 0
    %p32 = por %p30, %p31
    %p33 = scmp.ne.s32.totalorder %s22, %s25
    %p34 = scmp.eq.s32.totalorder %s17, 2
    %p35 = por %p33, %p34
    %p36 = scmp.ne.s32.totalorder %s25, %s26
    %p37 = scmp.eq.s32.totalorder %s17, 0
    %p38 = por %p36, %p37
    %p39 = scmp.ne.s32.totalorder %s25, %s26
    %p40 = scmp.eq.s32.totalorder %s18, 2
    %p41 = por %p39, %p40
    %p43 = scmp.ne.s32.totalorder %s26, %s42
    %p44 = scmp.eq.s32.totalorder %s18, 0
    %p45 = por %p43, %p44
    %s47 = sadd.s32 %s46, 1
    %p50 = scmp.eq.s32.totalorder %s12, 2
    %p51 = scmp.ne.s32.totalorder %s46, %s48
    %p52 = scmp.eq.s32.totalorder %s12, 0
    %p53 = por %p51, %p52
    %p54 = scmp.ne.s32.totalorder %s46, %s48
    %p55 = scmp.eq.s32.totalorder %s17, 2
    %p56 = por %p54, %p55
    %p57 = scmp.ne.s32.totalorder %s48, %s49
    %p58 = scmp.eq.s32.totalorder %s17, 0
    %p59 = por %p57, %p58
    %p60 = scmp.ne.s32.totalorder %s48, %s49
    %p61 = scmp.eq.s32.totalorder %s18, 2
    %p62 = por %p60, %p61
    %p64 = scmp.ne.s32.totalorder %s49, %s63
    %p65 = scmp.eq.s32.totalorder %s18, 0
    %p66 = por %p64, %p65
    %s68 = sadd.s32 %s67, 1
    %p71 = scmp.eq.s32.totalorder %s12, 2
    %p72 = scmp.ne.s32.totalorder %s67, %s69
    %p73 = scmp.eq.s32.totalorder %s12, 0
    %p74 = por %p72, %p73
    %p75 = scmp.ne.s32.totalorder %s67, %s69
    %p76 = scmp.eq.s32.totalorder %s17, 2
    %p77 = por %p75, %p76
    %p78 = scmp.ne.s32.totalorder %s69, %s70
    %p79 = scmp.eq.s32.totalorder %s17, 0
    %p80 = por %p78, %p79
    %p81 = scmp.ne.s32.totalorder %s69, %s70
    %p82 = scmp.eq.s32.totalorder %s18, 2
    %p83 = por %p81, %p82
    %p85 = scmp.ne.s32.totalorder %s70, %s84
    %p86 = scmp.eq.s32.totalorder %s18, 0
    %p87 = por %p85, %p86
    %s89 = sadd.s32 %s88, 1
    %p92 = scmp.eq.s32.totalorder %s12, 2
    %p93 = scmp.ne.s32.totalorder %s88, %s90
    %p94 = scmp.eq.s32.totalorder %s12, 0
    %p95 = por %p93, %p94
    %p96 = scmp.ne.s32.totalorder %s88, %s90
    %p97 = scmp.eq.s32.totalorder %s17, 2
    %p98 = por %p96, %p97
    %p99 = scmp.ne.s32.totalorder %s90, %s91
    %p100 = scmp.eq.s32.totalorder %s17, 0
    %p101 = por %p99, %p100
    %p102 = scmp.ne.s32.totalorder %s90, %s91
    %p103 = scmp.eq.s32.totalorder %s18, 2
    %p104 = por %p102, %p103
    %p106 = scmp.ne.s32.totalorder %s91, %s105
    %p107 = scmp.eq.s32.totalorder %s18, 0
    %p108 = por %p106, %p107
    %s110 = sadd.s32 %s109, 1
    %p113 = scmp.eq.s32.totalorder %s12, 2
    %p114 = scmp.ne.s32.totalorder %s109, %s111
    %p115 = scmp.eq.s32.totalorder %s12, 0
    %p116 = por %p114, %p115
    %p117 = scmp.ne.s32.totalorder %s109, %s111
    %p118 = scmp.eq.s32.totalorder %s17, 2
    %p119 = por %p117, %p118
    %p120 = scmp.ne.s32.totalorder %s111, %s112
    %p121 = scmp.eq.s32.totalorder %s17, 0
    %p122 = por %p120, %p121
    %p123 = scmp.ne.s32.totalorder %s111, %s112
    %p124 = scmp.eq.s32.totalorder %s18, 2
    %p125 = por %p123, %p124
    %p127 = scmp.ne.s32.totalorder %s112, %s126
    %p128 = scmp.eq.s32.totalorder %s18, 0
    %p129 = por %p127, %p128
    %s130 = ssub.s32 %s12, %s19
    %p131 = scmp.eq.s32.totalorder %s130, 0
    %s133 = sadd.s32 %s132, 1
    %s134 = scalar_select %p131, %s132, %s133
    %p137 = pneg %p131
    %p138 = scmp.eq.s32.totalorder %s12, 2
    %p139 = por %p137, %p138
    %p140 = scmp.ne.s32.totalorder %s132, %s135
    %p141 = scmp.eq.s32.totalorder %s12, 0
    %p142 = por %p140, %p141
    %p143 = scmp.ne.s32.totalorder %s132, %s135
    %p144 = scmp.eq.s32.totalorder %s17, 2
    %p145 = por %p143, %p144
    %p146 = scmp.ne.s32.totalorder %s135, %s136
    %p147 = scmp.eq.s32.totalorder %s17, 0
    %p148 = por %p146, %p147
    %p149 = scmp.ne.s32.totalorder %s135, %s136
    %p150 = scmp.eq.s32.totalorder %s18, 2
    %p151 = por %p149, %p150
    %p153 = scmp.ne.s32.totalorder %s136, %s152
    %p154 = scmp.eq.s32.totalorder %s18, 0
    %p155 = por %p153, %p154
    %p156 = scmp.le.s32.totalorder 1, %s12
    %p157 = scmp.lt.s32.totalorder %s12, 4
    %p158 = pnand %p156, %p157
    %p159 = pneg %p158
    // Predicated region
    $region9: #{tpu_custom_call.1} parent=5 // pred_check
      _
    $region10: #{tpu_custom_call.1} parent=5 // pred_check_branch
      %161 = sbr.rel (%p158) target = $region12
    $region11: #{tpu_custom_call.1} parent=5 // pred_region
      %s162 = ssub.s32 %s12, 1
      // Predicated region
      $region13: #{tpu_custom_call.1} parent=11 // pred_check
        %p163 = pneg %p59
      $region14: #{tpu_custom_call.1} parent=11 // pred_check_branch
        %165 = sbr.rel (%p163) target = $region16
      $region15: #{tpu_custom_call.1} parent=11 // pred_region
        _
      $region16: #{tpu_custom_call.1} parent=11 // pred_fallthru
        _
      // Predicated region
      $region17: #{tpu_custom_call.1} parent=11 // pred_check
        %p166 = pneg %p80
      $region18: #{tpu_custom_call.1} parent=11 // pred_check_branch
        %168 = sbr.rel (%p166) target = $region20
      $region19: #{tpu_custom_call.1} parent=11 // pred_region
        _
      $region20: #{tpu_custom_call.1} parent=11 // pred_fallthru
        _
      // Predicated region
      $region21: #{tpu_custom_call.1} parent=11 // pred_check
        %p169 = pneg %p101
      $region22: #{tpu_custom_call.1} parent=11 // pred_check_branch
        %171 = sbr.rel (%p169) target = $region24
      $region23: #{tpu_custom_call.1} parent=11 // pred_region
        _
      $region24: #{tpu_custom_call.1} parent=11 // pred_fallthru
        _
      // Predicated region
      $region25: #{tpu_custom_call.1} parent=11 // pred_check
        %p172 = pneg %p122
      $region26: #{tpu_custom_call.1} parent=11 // pred_check_branch
        %174 = sbr.rel (%p172) target = $region28
      $region27: #{tpu_custom_call.1} parent=11 // pred_region
        _
      $region28: #{tpu_custom_call.1} parent=11 // pred_fallthru
        _
    $region12: #{tpu_custom_call.1} parent=5 // pred_fallthru
      _
    %p175 = scmp.lt.s32.totalorder %s12, 3
    // Predicated region
    $region29: #{tpu_custom_call.1} parent=5 // pred_check
      %p176 = pneg %p175
    $region30: #{tpu_custom_call.1} parent=5 // pred_check_branch
      %178 = sbr.rel (%p176) target = $region32
    $region31: #{tpu_custom_call.1} parent=5 // pred_region
      // Predicated region
      $region33: #{tpu_custom_call.1} parent=31 // pred_check
        %p179 = pneg %p32
      $region34: #{tpu_custom_call.1} parent=31 // pred_check_branch
        %181 = sbr.rel (%p179) target = $region36
      $region35: #{tpu_custom_call.1} parent=31 // pred_region
        %s182 = smul.u32 64, %s12
        %p183 = scmp.lt.s32.totalorder %s182, 191
        %s184 = scalar_select %p183, %s182, 191
        %s185 = smul.addr %s184, 8
        %s186 = scalar_lea.vmem %s0, %s185
        %s187 = smul.u32 64, %s12
      $region36: #{tpu_custom_call.1} parent=31 // pred_fallthru
        _
    $region32: #{tpu_custom_call.1} parent=5 // pred_fallthru
      _
    %p188 = scmp.le.s32.totalorder 1, %s12
    %p189 = scmp.lt.s32.totalorder %s12, 4
    %p190 = pnand %p188, %p189
    %p191 = pneg %p190
    // Predicated region
    $region37: #{tpu_custom_call.1} parent=5 // pred_check
      _
    $region38: #{tpu_custom_call.1} parent=5 // pred_check_branch
      %193 = sbr.rel (%p190) target = $region40
    $region39: #{tpu_custom_call.1} parent=5 // pred_region
      %s194 = ssub.s32 %s12, 1
      %s195 = smul.u32 64, %s17
      %p196 = scmp.lt.s32.totalorder %s195, 191
      %s197 = scalar_select %p196, %s195, 191
      %s198 = smul.addr %s197, 8
      %s199 = scalar_lea.vmem %s0, %s198
      %p200 = pneg %p38
      %p201 = pneg %p35
      %p202 = pneg %p59
      %p203 = pneg %p56
      %p204 = pneg %p80
      %p205 = pneg %p77
      %p206 = pneg %p101
      %p207 = pneg %p98
      %p208 = pneg %p122
      %p209 = pneg %p119
      %p210 = pneg %p148
      %p211 = pneg %p145
      %s212 = smul.u32 64, %s17
      %p213 = scmp.lt.s32.totalorder %s212, 191
      %s214 = scalar_select %p213, %s212, 191
      %s215 = smul.addr %s214, 8
      %s216 = scalar_lea.vmem %s5, %s215
      %s217 = smul.u32 64, %s17
      %p218 = scmp.lt.s32.totalorder %s217, 191
      %s219 = scalar_select %p218, %s217, 191
      %s220 = smul.addr %s219, 8
      %s221 = scalar_lea.vmem %s0, %s220
      %s222 = smul.u32 64, %s17
      %s223 = smul.u32 64, %s17
      %p224 = scmp.lt.s32.totalorder %s223, 191
      %s225 = scalar_select %p224, %s223, 191
      %s226 = smul.addr %s225, 8
      %s227 = scalar_lea.vmem %s5, %s226
      %s228 = smul.u32 64, %s17
      %v229 = vld [vmem:[%s221] sm:$0xff]
      %v230 = vld [vmem:[%s221 + $0x8] sm:$0xff]
      %v231 = vld [vmem:[%s221 + $0x10] sm:$0xff]
      %v232 = vld [vmem:[%s221 + $0x18] sm:$0xff]
      %v233 = vld [vmem:[%s221 + $0x20] sm:$0xff]
      %v234 = vld [vmem:[%s221 + $0x28] sm:$0xff]
      %v235 = vld [vmem:[%s221 + $0x30] sm:$0xff]
      %v236 = vld [vmem:[%s221 + $0x38] sm:$0xff]
      %v237 = vld [vmem:[%s221 + $0x40] sm:$0xff]
      %v238 = vld [vmem:[%s221 + $0x48] sm:$0xff]
      %v239 = vld [vmem:[%s221 + $0x50] sm:$0xff]
      %v240 = vld [vmem:[%s221 + $0x58] sm:$0xff]
      %v241 = vld [vmem:[%s221 + $0x60] sm:$0xff]
      %v242 = vld [vmem:[%s221 + $0x68] sm:$0xff]
      %v243 = vld [vmem:[%s221 + $0x70] sm:$0xff]
      %v244 = vld [vmem:[%s221 + $0x78] sm:$0xff]
      %v245 = vld [vmem:[%s221 + $0x80] sm:$0xff]
      %v246 = vld [vmem:[%s221 + $0x88] sm:$0xff]
      %v247 = vld [vmem:[%s221 + $0x90] sm:$0xff]
      %v248 = vld [vmem:[%s221 + $0x98] sm:$0xff]
      %v249 = vld [vmem:[%s221 + $0xa0] sm:$0xff]
      %v250 = vld [vmem:[%s221 + $0xa8] sm:$0xff]
      %v251 = vld [vmem:[%s221 + $0xb0] sm:$0xff]
      %v252 = vld [vmem:[%s221 + $0xb8] sm:$0xff]
      %v253 = vld [vmem:[%s221 + $0xc0] sm:$0xff]
      %v254 = vld [vmem:[%s221 + $0xc8] sm:$0xff]
      %v255 = vld [vmem:[%s221 + $0xd0] sm:$0xff]
      %v256 = vld [vmem:[%s221 + $0xd8] sm:$0xff]
      %v257 = vld [vmem:[%s221 + $0xe0] sm:$0xff]
      %v258 = vld [vmem:[%s221 + $0xe8] sm:$0xff]
      %v259 = vld [vmem:[%s221 + $0xf0] sm:$0xff]
      %v260 = vld [vmem:[%s221 + $0xf8] sm:$0xff]
      %v261 = vld [vmem:[%s221 + $0x100] sm:$0xff]
      %v262 = vld [vmem:[%s221 + $0x108] sm:$0xff]
      %v263 = vld [vmem:[%s221 + $0x110] sm:$0xff]
      %v264 = vld [vmem:[%s221 + $0x118] sm:$0xff]
      %v265 = vld [vmem:[%s221 + $0x120] sm:$0xff]
      %v266 = vld [vmem:[%s221 + $0x128] sm:$0xff]
      %v267 = vld [vmem:[%s221 + $0x130] sm:$0xff]
      %v268 = vld [vmem:[%s221 + $0x138] sm:$0xff]
      %v269 = vld [vmem:[%s221 + $0x140] sm:$0xff]
      %v270 = vld [vmem:[%s221 + $0x148] sm:$0xff]
      %v271 = vld [vmem:[%s221 + $0x150] sm:$0xff]
      %v272 = vld [vmem:[%s221 + $0x158] sm:$0xff]
      %v273 = vld [vmem:[%s221 + $0x160] sm:$0xff]
      %v274 = vld [vmem:[%s221 + $0x168] sm:$0xff]
      %v275 = vld [vmem:[%s221 + $0x170] sm:$0xff]
      %v276 = vld [vmem:[%s221 + $0x178] sm:$0xff]
      %v277 = vld [vmem:[%s221 + $0x180] sm:$0xff]
      %v278 = vld [vmem:[%s221 + $0x188] sm:$0xff]
      %v279 = vld [vmem:[%s221 + $0x190] sm:$0xff]
      %v280 = vld [vmem:[%s221 + $0x198] sm:$0xff]
      %v281 = vld [vmem:[%s221 + $0x1a0] sm:$0xff]
      %v282 = vld [vmem:[%s221 + $0x1a8] sm:$0xff]
      %v283 = vld [vmem:[%s221 + $0x1b0] sm:$0xff]
      %v284 = vld [vmem:[%s221 + $0x1b8] sm:$0xff]
      %v285 = vld [vmem:[%s221 + $0x1c0] sm:$0xff]
      %v286 = vld [vmem:[%s221 + $0x1c8] sm:$0xff]
      %v287 = vld [vmem:[%s221 + $0x1d0] sm:$0xff]
      %v288 = vld [vmem:[%s221 + $0x1d8] sm:$0xff]
      %v289 = vld [vmem:[%s221 + $0x1e0] sm:$0xff]
      %v290 = vld [vmem:[%s221 + $0x1e8] sm:$0xff]
      %v291 = vld [vmem:[%s221 + $0x1f0] sm:$0xff]
      %v292 = vld [vmem:[%s221 + $0x1f8] sm:$0xff]
      %v293 = vld [vmem:[%s1] sm:$0xff]
      %v294 = vld [vmem:[%s1 + $0x8] sm:$0xff]
      %v295 = vld [vmem:[%s1 + $0x10] sm:$0xff]
      %v296 = vld [vmem:[%s1 + $0x18] sm:$0xff]
      %v297 = vld [vmem:[%s2] sm:$0x1]
      %v299 = vlaneseq
      %v300 = vshrl.u32 %v299, 7
      %v301 = vsub.s32 0, %v300
      %v302 = vrot.slane %v297, %v301
      %vm304 = vcmask 261120
      %v306 = vsel %vm304, %v229, 0
      %v309 = vsel %vm304, %v230, 0
      %v312 = vsel %vm304, %v231, 0
      %v315 = vsel %vm304, %v232, 0
      %v318 = vsel %vm304, %v233, 0
      %v321 = vsel %vm304, %v234, 0
      %v324 = vsel %vm304, %v235, 0
      %v327 = vsel %vm304, %v236, 0
      %v330 = vsel %vm304, %v237, 0
      %v333 = vsel %vm304, %v238, 0
      %v336 = vsel %vm304, %v239, 0
      %v339 = vsel %vm304, %v240, 0
      %v342 = vsel %vm304, %v241, 0
      %v345 = vsel %vm304, %v242, 0
      %v348 = vsel %vm304, %v243, 0
      %v351 = vsel %vm304, %v244, 0
      %v354 = vsel %vm304, %v245, 0
      %v357 = vsel %vm304, %v246, 0
      %v360 = vsel %vm304, %v247, 0
      %v363 = vsel %vm304, %v248, 0
      %v366 = vsel %vm304, %v249, 0
      %v369 = vsel %vm304, %v250, 0
      %v372 = vsel %vm304, %v251, 0
      %v375 = vsel %vm304, %v252, 0
      %v378 = vsel %vm304, %v253, 0
      %v381 = vsel %vm304, %v254, 0
      %v384 = vsel %vm304, %v255, 0
      %v387 = vsel %vm304, %v256, 0
      %v390 = vsel %vm304, %v257, 0
      %v393 = vsel %vm304, %v258, 0
      %v396 = vsel %vm304, %v259, 0
      %v399 = vsel %vm304, %v260, 0
      %v402 = vsel %vm304, %v261, 0
      %v405 = vsel %vm304, %v262, 0
      %v408 = vsel %vm304, %v263, 0
      %v411 = vsel %vm304, %v264, 0
      %v414 = vsel %vm304, %v265, 0
      %v417 = vsel %vm304, %v266, 0
      %v420 = vsel %vm304, %v267, 0
      %v423 = vsel %vm304, %v268, 0
      %v426 = vsel %vm304, %v269, 0
      %v429 = vsel %vm304, %v270, 0
      %v432 = vsel %vm304, %v271, 0
      %v435 = vsel %vm304, %v272, 0
      %v438 = vsel %vm304, %v273, 0
      %v441 = vsel %vm304, %v274, 0
      %v444 = vsel %vm304, %v275, 0
      %v447 = vsel %vm304, %v276, 0
      %v450 = vsel %vm304, %v277, 0
      %v453 = vsel %vm304, %v278, 0
      %v456 = vsel %vm304, %v279, 0
      %v459 = vsel %vm304, %v280, 0
      %v462 = vsel %vm304, %v281, 0
      %v465 = vsel %vm304, %v282, 0
      %v468 = vsel %vm304, %v283, 0
      %v471 = vsel %vm304, %v284, 0
      %v474 = vsel %vm304, %v285, 0
      %v477 = vsel %vm304, %v286, 0
      %v480 = vsel %vm304, %v287, 0
      %v483 = vsel %vm304, %v288, 0
      %v486 = vsel %vm304, %v289, 0
      %v489 = vsel %vm304, %v290, 0
      %v492 = vsel %vm304, %v291, 0
      %v495 = vsel %vm304, %v292, 0
      %497 = vmatprep.subr.mxu0 0.0
      %498 = vmatpush1.msra.mxu0 %v293
      %499 = vmatprep.subr.mxu0 0.0
      %500 = vmatpush1.msra.mxu0 %v294
      %501 = vmatprep.subr.mxu0 0.0
      %502 = vmatpush1.msra.mxu0 %v295
      %503 = vmatprep.subr.mxu0 0.0
      %504 = vmatpush1.msra.mxu0 %v296
      %505 = vmatprep.subr.mxu0 0.0
      %506 = vmatpush1.msra.mxu0 0.0
      %507 = vmatprep.subr.mxu0 0.0
      %508 = vmatpush1.msra.mxu0 0.0
      %509 = vmatprep.subr.mxu0 0.0
      %510 = vmatpush1.msra.mxu0 0.0
      %511 = vmatprep.subr.mxu0 0.0
      %512 = vmatpush1.msra.mxu0 0.0
      %513 = vmatprep.subr.mxu0 0.0
      %514 = vmatpush1.msra.mxu0 0.0
      %515 = vmatprep.subr.mxu0 0.0
      %516 = vmatpush1.msra.mxu0 0.0
      %517 = vmatprep.subr.mxu0 0.0
      %518 = vmatpush1.msra.mxu0 0.0
      %519 = vmatprep.subr.mxu0 0.0
      %520 = vmatpush1.msra.mxu0 0.0
      %521 = vmatprep.subr.mxu0 0.0
      %522 = vmatpush1.msra.mxu0 0.0
      %523 = vmatprep.subr.mxu0 0.0
      %524 = vmatpush1.msra.mxu0 0.0
      %525 = vmatprep.subr.mxu0 0.0
      %526 = vmatpush1.msra.mxu0 0.0
      %527 = vmatprep.subr.mxu0 0.0
      %528 = vmatpush1.msra.mxu0 0.0
      %529 = vmatprep.subr.mxu0 0.0
      %530 = vmatpush1.msra.mxu0 0.0
      %531 = vmatprep.subr.mxu0 0.0
      %532 = vmatpush1.msra.mxu0 0.0
      %533 = vmatprep.subr.mxu0 0.0
      %534 = vmatpush1.msra.mxu0 0.0
      %535 = vmatprep.subr.mxu0 0.0
      %536 = vmatpush1.msra.mxu0 0.0
      %537 = vmatprep.subr.mxu0 0.0
      %538 = vmatpush1.msra.mxu0 0.0
      %539 = vmatprep.subr.mxu0 0.0
      %540 = vmatpush1.msra.mxu0 0.0
      %541 = vmatprep.subr.mxu0 0.0
      %542 = vmatpush1.msra.mxu0 0.0
      %543 = vmatprep.subr.mxu0 0.0
      %544 = vmatpush1.msra.mxu0 0.0
      %545 = vmatprep.subr.mxu0 0.0
      %546 = vmatpush1.msra.mxu0 0.0
      %547 = vmatprep.subr.mxu0 0.0
      %548 = vmatpush1.msra.mxu0 0.0
      %549 = vmatprep.subr.mxu0 0.0
      %550 = vmatpush1.msra.mxu0 0.0
      %551 = vmatprep.subr.mxu0 0.0
      %552 = vmatpush1.msra.mxu0 0.0
      %553 = vmatprep.subr.mxu0 0.0
      %554 = vmatpush1.msra.mxu0 0.0
      %555 = vmatprep.subr.mxu0 0.0
      %556 = vmatpush1.msra.mxu0 0.0
      %557 = vmatprep.subr.mxu0 0.0
      %558 = vmatpush1.msra.mxu0 0.0
      %559 = vmatprep.subr.mxu0 0.0
      %560 = vmatpush1.msra.mxu0 0.0
      %561 = vmatprep.mubr.f32.mxu0 0.0
      %562 = vmatmul.mubr.f32.gmra.mrb[0].mxu0 %v306
      %v563 = vpop.f32.mrb[0].mxu0
      %v564 = vadd.f32 %v302, %v563
      %v565 = vpop.f32.mrb[0].mxu0
      %566 = vmatprep.mubr.f32.mxu0 0.0
      %567 = vmatmul.mubr.f32.gmra.mrb[0].mxu0 %v309
      %v568 = vpop.f32.mrb[0].mxu0
      %v569 = vadd.f32 %v302, %v568
      %v570 = vpop.f32.mrb[0].mxu0
      %571 = vmatprep.mubr.f32.mxu0 0.0
      %572 = vmatmul.mubr.f32.gmra.mrb[0].mxu0 %v312
      %v573 = vpop.f32.mrb[0].mxu0
      %v574 = vadd.f32 %v302, %v573
      %v575 = vpop.f32.mrb[0].mxu0
      %576 = vmatprep.mubr.f32.mxu0 0.0
      %577 = vmatmul.mubr.f32.gmra.mrb[0].mxu0 %v315
      %v578 = vpop.f32.mrb[0].mxu0
      %v579 = vadd.f32 %v302, %v578
      %v580 = vpop.f32.mrb[0].mxu0
      %581 = vmatprep.mubr.f32.mxu0 0.0
      %582 = vmatmul.mubr.f32.gmra.mrb[0].mxu0 %v318
      %v583 = vpop.f32.mrb[0].mxu0
      %v584 = vadd.f32 %v302, %v583
      %v585 = vpop.f32.mrb[0].mxu0
      %586 = vmatprep.mubr.f32.mxu0 0.0
      %587 = vmatmul.mubr.f32.gmra.mrb[0].mxu0 %v321
      %v588 = vpop.f32.mrb[0].mxu0
      %v589 = vadd.f32 %v302, %v588
      %v590 = vpop.f32.mrb[0].mxu0
      %591 = vmatprep.mubr.f32.mxu0 0.0
      %592 = vmatmul.mubr.f32.gmra.mrb[0].mxu0 %v324
      %v593 = vpop.f32.mrb[0].mxu0
      %v594 = vadd.f32 %v302, %v593
      %v595 = vpop.f32.mrb[0].mxu0
      %596 = vmatprep.mubr.f32.mxu0 0.0
      %597 = vmatmul.mubr.f32.gmra.mrb[0].mxu0 %v327
      %v598 = vpop.f32.mrb[0].mxu0
      %v599 = vadd.f32 %v302, %v598
      %v600 = vpop.f32.mrb[0].mxu0
      %601 = vmatprep.mubr.f32.mxu0 0.0
      %602 = vmatmul.mubr.f32.gmra.mrb[0].mxu0 %v330
      %v603 = vpop.f32.mrb[0].mxu0
      %v604 = vadd.f32 %v302, %v603
      %v605 = vpop.f32.mrb[0].mxu0
      %606 = vmatprep.mubr.f32.mxu0 0.0
      %607 = vmatmul.mubr.f32.gmra.mrb[0].mxu0 %v333
      %v608 = vpop.f32.mrb[0].mxu0
      %v609 = vadd.f32 %v302, %v608
      %v610 = vpop.f32.mrb[0].mxu0
      %611 = vmatprep.mubr.f32.mxu0 0.0
      %612 = vmatmul.mubr.f32.gmra.mrb[0].mxu0 %v336
      %v613 = vpop.f32.mrb[0].mxu0
      %v614 = vadd.f32 %v302, %v613
      %v615 = vpop.f32.mrb[0].mxu0
      %616 = vmatprep.mubr.f32.mxu0 0.0
      %617 = vmatmul.mubr.f32.gmra.mrb[0].mxu0 %v339
      %v618 = vpop.f32.mrb[0].mxu0
      %v619 = vadd.f32 %v302, %v618
      %v620 = vpop.f32.mrb[0].mxu0
      %621 = vmatprep.mubr.f32.mxu0 0.0
      %622 = vmatmul.mubr.f32.gmra.mrb[0].mxu0 %v342
      %v623 = vpop.f32.mrb[0].mxu0
      %v624 = vadd.f32 %v302, %v623
      %v625 = vpop.f32.mrb[0].mxu0
      %626 = vmatprep.mubr.f32.mxu0 0.0
      %627 = vmatmul.mubr.f32.gmra.mrb[0].mxu0 %v345
      %v628 = vpop.f32.mrb[0].mxu0
      %v629 = vadd.f32 %v302, %v628
      %v630 = vpop.f32.mrb[0].mxu0
      %631 = vmatprep.mubr.f32.mxu0 0.0
      %632 = vmatmul.mubr.f32.gmra.mrb[0].mxu0 %v348
      %v633 = vpop.f32.mrb[0].mxu0
      %v634 = vadd.f32 %v302, %v633
      %v635 = vpop.f32.mrb[0].mxu0
      %636 = vmatprep.mubr.f32.mxu0 0.0
      %637 = vmatmul.mubr.f32.gmra.mrb[0].mxu0 %v351
      %v638 = vpop.f32.mrb[0].mxu0
      %v639 = vadd.f32 %v302, %v638
      %v640 = vpop.f32.mrb[0].mxu0
      %641 = vmatprep.mubr.f32.mxu0 0.0
      %642 = vmatmul.mubr.f32.gmra.mrb[0].mxu0 %v354
      %v643 = vpop.f32.mrb[0].mxu0
      %v644 = vadd.f32 %v302, %v643
      %v645 = vpop.f32.mrb[0].mxu0
      %646 = vmatprep.mubr.f32.mxu0 0.0
      %647 = vmatmul.mubr.f32.gmra.mrb[0].mxu0 %v357
      %v648 = vpop.f32.mrb[0].mxu0
      %v649 = vadd.f32 %v302, %v648
      %v650 = vpop.f32.mrb[0].mxu0
      %651 = vmatprep.mubr.f32.mxu0 0.0
      %652 = vmatmul.mubr.f32.gmra.mrb[0].mxu0 %v360
      %v653 = vpop.f32.mrb[0].mxu0
      %v654 = vadd.f32 %v302, %v653
      %v655 = vpop.f32.mrb[0].mxu0
      %656 = vmatprep.mubr.f32.mxu0 0.0
      %657 = vmatmul.mubr.f32.gmra.mrb[0].mxu0 %v363
      %v658 = vpop.f32.mrb[0].mxu0
      %v659 = vadd.f32 %v302, %v658
      %v660 = vpop.f32.mrb[0].mxu0
      %661 = vmatprep.mubr.f32.mxu0 0.0
      %662 = vmatmul.mubr.f32.gmra.mrb[0].mxu0 %v366
      %v663 = vpop.f32.mrb[0].mxu0
      %v664 = vadd.f32 %v302, %v663
      %v665 = vpop.f32.mrb[0].mxu0
      %666 = vmatprep.mubr.f32.mxu0 0.0
      %667 = vmatmul.mubr.f32.gmra.mrb[0].mxu0 %v369
      %v668 = vpop.f32.mrb[0].mxu0
      %v669 = vadd.f32 %v302, %v668
      %v670 = vpop.f32.mrb[0].mxu0
      %671 = vmatprep.mubr.f32.mxu0 0.0
      %672 = vmatmul.mubr.f32.gmra.mrb[0].mxu0 %v372
      %v673 = vpop.f32.mrb[0].mxu0
      %v674 = vadd.f32 %v302, %v673
      %v675 = vpop.f32.mrb[0].mxu0
      %676 = vmatprep.mubr.f32.mxu0 0.0
      %677 = vmatmul.mubr.f32.gmra.mrb[0].mxu0 %v375
      %v678 = vpop.f32.mrb[0].mxu0
      %v679 = vadd.f32 %v302, %v678
      %v680 = vpop.f32.mrb[0].mxu0
      %681 = vmatprep.mubr.f32.mxu0 0.0
      %682 = vmatmul.mubr.f32.gmra.mrb[0].mxu0 %v378
      %v683 = vpop.f32.mrb[0].mxu0
      %v684 = vadd.f32 %v302, %v683
      %v685 = vpop.f32.mrb[0].mxu0
      %686 = vmatprep.mubr.f32.mxu0 0.0
      %687 = vmatmul.mubr.f32.gmra.mrb[0].mxu0 %v381
      %v688 = vpop.f32.mrb[0].mxu0
      %v689 = vadd.f32 %v302, %v688
      %v690 = vpop.f32.mrb[0].mxu0
      %691 = vmatprep.mubr.f32.mxu0 0.0
      %692 = vmatmul.mubr.f32.gmra.mrb[0].mxu0 %v384
      %v693 = vpop.f32.mrb[0].mxu0
      %v694 = vadd.f32 %v302, %v693
      %v695 = vpop.f32.mrb[0].mxu0
      %696 = vmatprep.mubr.f32.mxu0 0.0
      %697 = vmatmul.mubr.f32.gmra.mrb[0].mxu0 %v387
      %v698 = vpop.f32.mrb[0].mxu0
      %v699 = vadd.f32 %v302, %v698
      %v700 = vpop.f32.mrb[0].mxu0
      %701 = vmatprep.mubr.f32.mxu0 0.0
      %702 = vmatmul.mubr.f32.gmra.mrb[0].mxu0 %v390
      %v703 = vpop.f32.mrb[0].mxu0
      %v704 = vadd.f32 %v302, %v703
      %v705 = vpop.f32.mrb[0].mxu0
      %706 = vmatprep.mubr.f32.mxu0 0.0
      %707 = vmatmul.mubr.f32.gmra.mrb[0].mxu0 %v393
      %v708 = vpop.f32.mrb[0].mxu0
      %v709 = vadd.f32 %v302, %v708
      %v710 = vpop.f32.mrb[0].mxu0
      %711 = vmatprep.mubr.f32.mxu0 0.0
      %712 = vmatmul.mubr.f32.gmra.mrb[0].mxu0 %v396
      %v713 = vpop.f32.mrb[0].mxu0
      %v714 = vadd.f32 %v302, %v713
      %v715 = vpop.f32.mrb[0].mxu0
      %716 = vmatprep.mubr.f32.mxu0 0.0
      %717 = vmatmul.mubr.f32.gmra.mrb[0].mxu0 %v399
      %v718 = vpop.f32.mrb[0].mxu0
      %v719 = vadd.f32 %v302, %v718
      %v720 = vpop.f32.mrb[0].mxu0
      %721 = vmatprep.mubr.f32.mxu0 0.0
      %722 = vmatmul.mubr.f32.gmra.mrb[0].mxu0 %v402
      %v723 = vpop.f32.mrb[0].mxu0
      %v724 = vadd.f32 %v302, %v723
      %v725 = vpop.f32.mrb[0].mxu0
      %726 = vmatprep.mubr.f32.mxu0 0.0
      %727 = vmatmul.mubr.f32.gmra.mrb[0].mxu0 %v405
      %v728 = vpop.f32.mrb[0].mxu0
      %v729 = vadd.f32 %v302, %v728
      %v730 = vpop.f32.mrb[0].mxu0
      %731 = vmatprep.mubr.f32.mxu0 0.0
      %732 = vmatmul.mubr.f32.gmra.mrb[0].mxu0 %v408
      %v733 = vpop.f32.mrb[0].mxu0
      %v734 = vadd.f32 %v302, %v733
      %v735 = vpop.f32.mrb[0].mxu0
      %736 = vmatprep.mubr.f32.mxu0 0.0
      %737 = vmatmul.mubr.f32.gmra.mrb[0].mxu0 %v411
      %v738 = vpop.f32.mrb[0].mxu0
      %v739 = vadd.f32 %v302, %v738
      %v740 = vpop.f32.mrb[0].mxu0
      %741 = vmatprep.mubr.f32.mxu0 0.0
      %742 = vmatmul.mubr.f32.gmra.mrb[0].mxu0 %v414
      %v743 = vpop.f32.mrb[0].mxu0
      %v744 = vadd.f32 %v302, %v743
      %v745 = vpop.f32.mrb[0].mxu0
      %746 = vmatprep.mubr.f32.mxu0 0.0
      %747 = vmatmul.mubr.f32.gmra.mrb[0].mxu0 %v417
      %v748 = vpop.f32.mrb[0].mxu0
      %v749 = vadd.f32 %v302, %v748
      %v750 = vpop.f32.mrb[0].mxu0
      %751 = vmatprep.mubr.f32.mxu0 0.0
      %752 = vmatmul.mubr.f32.gmra.mrb[0].mxu0 %v420
      %v753 = vpop.f32.mrb[0].mxu0
      %v754 = vadd.f32 %v302, %v753
      %v755 = vpop.f32.mrb[0].mxu0
      %756 = vmatprep.mubr.f32.mxu0 0.0
      %757 = vmatmul.mubr.f32.gmra.mrb[0].mxu0 %v423
      %v758 = vpop.f32.mrb[0].mxu0
      %v759 = vadd.f32 %v302, %v758
      %v760 = vpop.f32.mrb[0].mxu0
      %761 = vmatprep.mubr.f32.mxu0 0.0
      %762 = vmatmul.mubr.f32.gmra.mrb[0].mxu0 %v426
      %v763 = vpop.f32.mrb[0].mxu0
      %v764 = vadd.f32 %v302, %v763
      %v765 = vpop.f32.mrb[0].mxu0
      %766 = vmatprep.mubr.f32.mxu0 0.0
      %767 = vmatmul.mubr.f32.gmra.mrb[0].mxu0 %v429
      %v768 = vpop.f32.mrb[0].mxu0
      %v769 = vadd.f32 %v302, %v768
      %v770 = vpop.f32.mrb[0].mxu0
      %771 = vmatprep.mubr.f32.mxu0 0.0
      %772 = vmatmul.mubr.f32.gmra.mrb[0].mxu0 %v432
      %v773 = vpop.f32.mrb[0].mxu0
      %v774 = vadd.f32 %v302, %v773
      %v775 = vpop.f32.mrb[0].mxu0
      %776 = vmatprep.mubr.f32.mxu0 0.0
      %777 = vmatmul.mubr.f32.gmra.mrb[0].mxu0 %v435
      %v778 = vpop.f32.mrb[0].mxu0
      %v779 = vadd.f32 %v302, %v778
      %v780 = vpop.f32.mrb[0].mxu0
      %781 = vmatprep.mubr.f32.mxu0 0.0
      %782 = vmatmul.mubr.f32.gmra.mrb[0].mxu0 %v438
      %v783 = vpop.f32.mrb[0].mxu0
      %v784 = vadd.f32 %v302, %v783
      %v785 = vpop.f32.mrb[0].mxu0
      %786 = vmatprep.mubr.f32.mxu0 0.0
      %787 = vmatmul.mubr.f32.gmra.mrb[0].mxu0 %v441
      %v788 = vpop.f32.mrb[0].mxu0
      %v789 = vadd.f32 %v302, %v788
      %v790 = vpop.f32.mrb[0].mxu0
      %791 = vmatprep.mubr.f32.mxu0 0.0
      %792 = vmatmul.mubr.f32.gmra.mrb[0].mxu0 %v444
      %v793 = vpop.f32.mrb[0].mxu0
      %v794 = vadd.f32 %v302, %v793
      %v795 = vpop.f32.mrb[0].mxu0
      %796 = vmatprep.mubr.f32.mxu0 0.0
      %797 = vmatmul.mubr.f32.gmra.mrb[0].mxu0 %v447
      %v798 = vpop.f32.mrb[0].mxu0
      %v799 = vadd.f32 %v302, %v798
      %v800 = vpop.f32.mrb[0].mxu0
      %801 = vmatprep.mubr.f32.mxu0 0.0
      %802 = vmatmul.mubr.f32.gmra.mrb[0].mxu0 %v450
      %v803 = vpop.f32.mrb[0].mxu0
      %v804 = vadd.f32 %v302, %v803
      %v805 = vpop.f32.mrb[0].mxu0
      %806 = vmatprep.mubr.f32.mxu0 0.0
      %807 = vmatmul.mubr.f32.gmra.mrb[0].mxu0 %v453
      %v808 = vpop.f32.mrb[0].mxu0
      %v809 = vadd.f32 %v302, %v808
      %v810 = vpop.f32.mrb[0].mxu0
      %811 = vmatprep.mubr.f32.mxu0 0.0
      %812 = vmatmul.mubr.f32.gmra.mrb[0].mxu0 %v456
      %v813 = vpop.f32.mrb[0].mxu0
      %v814 = vadd.f32 %v302, %v813
      %v815 = vpop.f32.mrb[0].mxu0
      %816 = vmatprep.mubr.f32.mxu0 0.0
      %817 = vmatmul.mubr.f32.gmra.mrb[0].mxu0 %v459
      %v818 = vpop.f32.mrb[0].mxu0
      %v819 = vadd.f32 %v302, %v818
      %v820 = vpop.f32.mrb[0].mxu0
      %821 = vmatprep.mubr.f32.mxu0 0.0
      %822 = vmatmul.mubr.f32.gmra.mrb[0].mxu0 %v462
      %v823 = vpop.f32.mrb[0].mxu0
      %v824 = vadd.f32 %v302, %v823
      %v825 = vpop.f32.mrb[0].mxu0
      %826 = vmatprep.mubr.f32.mxu0 0.0
      %827 = vmatmul.mubr.f32.gmra.mrb[0].mxu0 %v465
      %v828 = vpop.f32.mrb[0].mxu0
      %v829 = vadd.f32 %v302, %v828
      %v830 = vpop.f32.mrb[0].mxu0
      %831 = vmatprep.mubr.f32.mxu0 0.0
      %832 = vmatmul.mubr.f32.gmra.mrb[0].mxu0 %v468
      %v833 = vpop.f32.mrb[0].mxu0
      %v834 = vadd.f32 %v302, %v833
      %v835 = vpop.f32.mrb[0].mxu0
      %836 = vmatprep.mubr.f32.mxu0 0.0
      %837 = vmatmul.mubr.f32.gmra.mrb[0].mxu0 %v471
      %v838 = vpop.f32.mrb[0].mxu0
      %v839 = vadd.f32 %v302, %v838
      %v840 = vpop.f32.mrb[0].mxu0
      %841 = vmatprep.mubr.f32.mxu0 0.0
      %842 = vmatmul.mubr.f32.gmra.mrb[0].mxu0 %v474
      %v843 = vpop.f32.mrb[0].mxu0
      %v844 = vadd.f32 %v302, %v843
      %v845 = vpop.f32.mrb[0].mxu0
      %846 = vmatprep.mubr.f32.mxu0 0.0
      %847 = vmatmul.mubr.f32.gmra.mrb[0].mxu0 %v477
      %v848 = vpop.f32.mrb[0].mxu0
      %v849 = vadd.f32 %v302, %v848
      %v850 = vpop.f32.mrb[0].mxu0
      %851 = vmatprep.mubr.f32.mxu0 0.0
      %852 = vmatmul.mubr.f32.gmra.mrb[0].mxu0 %v480
      %v853 = vpop.f32.mrb[0].mxu0
      %v854 = vadd.f32 %v302, %v853
      %v855 = vpop.f32.mrb[0].mxu0
      %856 = vmatprep.mubr.f32.mxu0 0.0
      %857 = vmatmul.mubr.f32.gmra.mrb[0].mxu0 %v483
      %v858 = vpop.f32.mrb[0].mxu0
      %v859 = vadd.f32 %v302, %v858
      %v860 = vpop.f32.mrb[0].mxu0
      %861 = vmatprep.mubr.f32.mxu0 0.0
      %862 = vmatmul.mubr.f32.gmra.mrb[0].mxu0 %v486
      %v863 = vpop.f32.mrb[0].mxu0
      %v864 = vadd.f32 %v302, %v863
      %v865 = vpop.f32.mrb[0].mxu0
      %866 = vmatprep.mubr.f32.mxu0 0.0
      %867 = vmatmul.mubr.f32.gmra.mrb[0].mxu0 %v489
      %v868 = vpop.f32.mrb[0].mxu0
      %v869 = vadd.f32 %v302, %v868
      %v870 = vpop.f32.mrb[0].mxu0
      %871 = vmatprep.mubr.f32.mxu0 0.0
      %872 = vmatmul.mubr.f32.gmra.mrb[0].mxu0 %v492
      %v873 = vpop.f32.mrb[0].mxu0
      %v874 = vadd.f32 %v302, %v873
      %v875 = vpop.f32.mrb[0].mxu0
      %876 = vmatprep.mubr.f32.mxu0 0.0
      %877 = vmatmul.mubr.f32.gmra.mrb[0].mxu0 %v495
      %v878 = vpop.f32.mrb[0].mxu0
      %v879 = vadd.f32 %v302, %v878
      %v880 = vpop.f32.mrb[0].mxu0
      %881 = vdwg.mxu0
      %v882 = vmax.f32 %v564, 0.0
      %v883 = vmax.f32 %v569, 0.0
      %v884 = vmax.f32 %v574, 0.0
      %v885 = vmax.f32 %v579, 0.0
      %v886 = vmax.f32 %v584, 0.0
      %v887 = vmax.f32 %v589, 0.0
      %v888 = vmax.f32 %v594, 0.0
      %v889 = vmax.f32 %v599, 0.0
      %v890 = vmax.f32 %v604, 0.0
      %v891 = vmax.f32 %v609, 0.0
      %v892 = vmax.f32 %v614, 0.0
      %v893 = vmax.f32 %v619, 0.0
      %v894 = vmax.f32 %v624, 0.0
      %v895 = vmax.f32 %v629, 0.0
      %v896 = vmax.f32 %v634, 0.0
      %v897 = vmax.f32 %v639, 0.0
      %v898 = vmax.f32 %v644, 0.0
      %v899 = vmax.f32 %v649, 0.0
      %v900 = vmax.f32 %v654, 0.0
      %v901 = vmax.f32 %v659, 0.0
      %v902 = vmax.f32 %v664, 0.0
      %v903 = vmax.f32 %v669, 0.0
      %v904 = vmax.f32 %v674, 0.0
      %v905 = vmax.f32 %v679, 0.0
      %v906 = vmax.f32 %v684, 0.0
      %v907 = vmax.f32 %v689, 0.0
      %v908 = vmax.f32 %v694, 0.0
      %v909 = vmax.f32 %v699, 0.0
      %v910 = vmax.f32 %v704, 0.0
      %v911 = vmax.f32 %v709, 0.0
      %v912 = vmax.f32 %v714, 0.0
      %v913 = vmax.f32 %v719, 0.0
      %v914 = vmax.f32 %v724, 0.0
      %v915 = vmax.f32 %v729, 0.0
      %v916 = vmax.f32 %v734, 0.0
      %v917 = vmax.f32 %v739, 0.0
      %v918 = vmax.f32 %v744, 0.0
      %v919 = vmax.f32 %v749, 0.0
      %v920 = vmax.f32 %v754, 0.0
      %v921 = vmax.f32 %v759, 0.0
      %v922 = vmax.f32 %v764, 0.0
      %v923 = vmax.f32 %v769, 0.0
      %v924 = vmax.f32 %v774, 0.0
      %v925 = vmax.f32 %v779, 0.0
      %v926 = vmax.f32 %v784, 0.0
      %v927 = vmax.f32 %v789, 0.0
      %v928 = vmax.f32 %v794, 0.0
      %v929 = vmax.f32 %v799, 0.0
      %v930 = vmax.f32 %v804, 0.0
      %v931 = vmax.f32 %v809, 0.0
      %v932 = vmax.f32 %v814, 0.0
      %v933 = vmax.f32 %v819, 0.0
      %v934 = vmax.f32 %v824, 0.0
      %v935 = vmax.f32 %v829, 0.0
      %v936 = vmax.f32 %v834, 0.0
      %v937 = vmax.f32 %v839, 0.0
      %v938 = vmax.f32 %v844, 0.0
      %v939 = vmax.f32 %v849, 0.0
      %v940 = vmax.f32 %v854, 0.0
      %v941 = vmax.f32 %v859, 0.0
      %v942 = vmax.f32 %v864, 0.0
      %v943 = vmax.f32 %v869, 0.0
      %v944 = vmax.f32 %v874, 0.0
      %v945 = vmax.f32 %v879, 0.0
      %v946 = vld [vmem:[%s3] sm:$0x1]
      %v948 = vlaneseq
      %v949 = vshrl.u32 %v948, 7
      %v950 = vsub.s32 0, %v949
      %v951 = vrot.slane %v946, %v950
      %v953 = vmul.f32 %v882, %v951
      %v954 = vmul.f32 %v883, %v951
      %v955 = vmul.f32 %v884, %v951
      %v956 = vmul.f32 %v885, %v951
      %v957 = vmul.f32 %v886, %v951
      %v958 = vmul.f32 %v887, %v951
      %v959 = vmul.f32 %v888, %v951
      %v960 = vmul.f32 %v889, %v951
      %v961 = vmul.f32 %v890, %v951
      %v962 = vmul.f32 %v891, %v951
      %v963 = vmul.f32 %v892, %v951
      %v964 = vmul.f32 %v893, %v951
      %v965 = vmul.f32 %v894, %v951
      %v966 = vmul.f32 %v895, %v951
      %v967 = vmul.f32 %v896, %v951
      %v968 = vmul.f32 %v897, %v951
      %v969 = vmul.f32 %v898, %v951
      %v970 = vmul.f32 %v899, %v951
      %v971 = vmul.f32 %v900, %v951
      %v972 = vmul.f32 %v901, %v951
      %v973 = vmul.f32 %v902, %v951
      %v974 = vmul.f32 %v903, %v951
      %v975 = vmul.f32 %v904, %v951
      %v976 = vmul.f32 %v905, %v951
      %v977 = vmul.f32 %v906, %v951
      %v978 = vmul.f32 %v907, %v951
      %v979 = vmul.f32 %v908, %v951
      %v980 = vmul.f32 %v909, %v951
      %v981 = vmul.f32 %v910, %v951
      %v982 = vmul.f32 %v911, %v951
      %v983 = vmul.f32 %v912, %v951
      %v984 = vmul.f32 %v913, %v951
      %v985 = vmul.f32 %v914, %v951
      %v986 = vmul.f32 %v915, %v951
      %v987 = vmul.f32 %v916, %v951
      %v988 = vmul.f32 %v917, %v951
      %v989 = vmul.f32 %v918, %v951
      %v990 = vmul.f32 %v919, %v951
      %v991 = vmul.f32 %v920, %v951
      %v992 = vmul.f32 %v921, %v951
      %v993 = vmul.f32 %v922, %v951
      %v994 = vmul.f32 %v923, %v951
      %v995 = vmul.f32 %v924, %v951
      %v996 = vmul.f32 %v925, %v951
      %v997 = vmul.f32 %v926, %v951
      %v998 = vmul.f32 %v927, %v951
      %v999 = vmul.f32 %v928, %v951
      %v1000 = vmul.f32 %v929, %v951
      %v1001 = vmul.f32 %v930, %v951
      %v1002 = vmul.f32 %v931, %v951
      %v1003 = vmul.f32 %v932, %v951
      %v1004 = vmul.f32 %v933, %v951
      %v1005 = vmul.f32 %v934, %v951
      %v1006 = vmul.f32 %v935, %v951
      %v1007 = vmul.f32 %v936, %v951
      %v1008 = vmul.f32 %v937, %v951
      %v1009 = vmul.f32 %v938, %v951
      %v1010 = vmul.f32 %v939, %v951
      %v1011 = vmul.f32 %v940, %v951
      %v1012 = vmul.f32 %v941, %v951
      %v1013 = vmul.f32 %v942, %v951
      %v1014 = vmul.f32 %v943, %v951
      %v1015 = vmul.f32 %v944, %v951
      %v1016 = vmul.f32 %v945, %v951
      %vm1017 = vcmask 130048
      %v1018 = vsel %vm1017, %v953, 0.0
      %1019 = vadd.xlane.f32.xlu0 %v1018
      %v1020 = vpop.xlane.xlu0 %1019
      %v1021 = vsel %vm1017, %v954, 0.0
      %1022 = vadd.xlane.f32.xlu0 %v1021
      %v1023 = vpop.xlane.xlu0 %1022
      %v1024 = vsel %vm1017, %v955, 0.0
      %1025 = vadd.xlane.f32.xlu0 %v1024
      %v1026 = vpop.xlane.xlu0 %1025
      %v1027 = vsel %vm1017, %v956, 0.0
      %1028 = vadd.xlane.f32.xlu0 %v1027
      %v1029 = vpop.xlane.xlu0 %1028
      %v1030 = vsel %vm1017, %v957, 0.0
      %1031 = vadd.xlane.f32.xlu0 %v1030
      %v1032 = vpop.xlane.xlu0 %1031
      %v1033 = vsel %vm1017, %v958, 0.0
      %1034 = vadd.xlane.f32.xlu0 %v1033
      %v1035 = vpop.xlane.xlu0 %1034
      %v1036 = vsel %vm1017, %v959, 0.0
      %1037 = vadd.xlane.f32.xlu0 %v1036
      %v1038 = vpop.xlane.xlu0 %1037
      %v1039 = vsel %vm1017, %v960, 0.0
      %1040 = vadd.xlane.f32.xlu0 %v1039
      %v1041 = vpop.xlane.xlu0 %1040
      %v1042 = vsel %vm1017, %v961, 0.0
      %1043 = vadd.xlane.f32.xlu0 %v1042
      %v1044 = vpop.xlane.xlu0 %1043
      %v1045 = vsel %vm1017, %v962, 0.0
      %1046 = vadd.xlane.f32.xlu0 %v1045
      %v1047 = vpop.xlane.xlu0 %1046
      %v1048 = vsel %vm1017, %v963, 0.0
      %1049 = vadd.xlane.f32.xlu0 %v1048
      %v1050 = vpop.xlane.xlu0 %1049
      %v1051 = vsel %vm1017, %v964, 0.0
      %1052 = vadd.xlane.f32.xlu0 %v1051
      %v1053 = vpop.xlane.xlu0 %1052
      %v1054 = vsel %vm1017, %v965, 0.0
      %1055 = vadd.xlane.f32.xlu0 %v1054
      %v1056 = vpop.xlane.xlu0 %1055
      %v1057 = vsel %vm1017, %v966, 0.0
      %1058 = vadd.xlane.f32.xlu0 %v1057
      %v1059 = vpop.xlane.xlu0 %1058
      %v1060 = vsel %vm1017, %v967, 0.0
      %1061 = vadd.xlane.f32.xlu0 %v1060
      %v1062 = vpop.xlane.xlu0 %1061
      %v1063 = vsel %vm1017, %v968, 0.0
      %1064 = vadd.xlane.f32.xlu0 %v1063
      %v1065 = vpop.xlane.xlu0 %1064
      %v1066 = vsel %vm1017, %v969, 0.0
      %1067 = vadd.xlane.f32.xlu0 %v1066
      %v1068 = vpop.xlane.xlu0 %1067
      %v1069 = vsel %vm1017, %v970, 0.0
      %1070 = vadd.xlane.f32.xlu0 %v1069
      %v1071 = vpop.xlane.xlu0 %1070
      %v1072 = vsel %vm1017, %v971, 0.0
      %1073 = vadd.xlane.f32.xlu0 %v1072
      %v1074 = vpop.xlane.xlu0 %1073
      %v1075 = vsel %vm1017, %v972, 0.0
      %1076 = vadd.xlane.f32.xlu0 %v1075
      %v1077 = vpop.xlane.xlu0 %1076
      %v1078 = vsel %vm1017, %v973, 0.0
      %1079 = vadd.xlane.f32.xlu0 %v1078
      %v1080 = vpop.xlane.xlu0 %1079
      %v1081 = vsel %vm1017, %v974, 0.0
      %1082 = vadd.xlane.f32.xlu0 %v1081
      %v1083 = vpop.xlane.xlu0 %1082
      %v1084 = vsel %vm1017, %v975, 0.0
      %1085 = vadd.xlane.f32.xlu0 %v1084
      %v1086 = vpop.xlane.xlu0 %1085
      %v1087 = vsel %vm1017, %v976, 0.0
      %1088 = vadd.xlane.f32.xlu0 %v1087
      %v1089 = vpop.xlane.xlu0 %1088
      %v1090 = vsel %vm1017, %v977, 0.0
      %1091 = vadd.xlane.f32.xlu0 %v1090
      %v1092 = vpop.xlane.xlu0 %1091
      %v1093 = vsel %vm1017, %v978, 0.0
      %1094 = vadd.xlane.f32.xlu0 %v1093
      %v1095 = vpop.xlane.xlu0 %1094
      %v1096 = vsel %vm1017, %v979, 0.0
      %1097 = vadd.xlane.f32.xlu0 %v1096
      %v1098 = vpop.xlane.xlu0 %1097
      %v1099 = vsel %vm1017, %v980, 0.0
      %1100 = vadd.xlane.f32.xlu0 %v1099
      %v1101 = vpop.xlane.xlu0 %1100
      %v1102 = vsel %vm1017, %v981, 0.0
      %1103 = vadd.xlane.f32.xlu0 %v1102
      %v1104 = vpop.xlane.xlu0 %1103
      %v1105 = vsel %vm1017, %v982, 0.0
      %1106 = vadd.xlane.f32.xlu0 %v1105
      %v1107 = vpop.xlane.xlu0 %1106
      %v1108 = vsel %vm1017, %v983, 0.0
      %1109 = vadd.xlane.f32.xlu0 %v1108
      %v1110 = vpop.xlane.xlu0 %1109
      %v1111 = vsel %vm1017, %v984, 0.0
      %1112 = vadd.xlane.f32.xlu0 %v1111
      %v1113 = vpop.xlane.xlu0 %1112
      %v1114 = vsel %vm1017, %v985, 0.0
      %1115 = vadd.xlane.f32.xlu0 %v1114
      %v1116 = vpop.xlane.xlu0 %1115
      %v1117 = vsel %vm1017, %v986, 0.0
      %1118 = vadd.xlane.f32.xlu0 %v1117
      %v1119 = vpop.xlane.xlu0 %1118
      %v1120 = vsel %vm1017, %v987, 0.0
      %1121 = vadd.xlane.f32.xlu0 %v1120
      %v1122 = vpop.xlane.xlu0 %1121
      %v1123 = vsel %vm1017, %v988, 0.0
      %1124 = vadd.xlane.f32.xlu0 %v1123
      %v1125 = vpop.xlane.xlu0 %1124
      %v1126 = vsel %vm1017, %v989, 0.0
      %1127 = vadd.xlane.f32.xlu0 %v1126
      %v1128 = vpop.xlane.xlu0 %1127
      %v1129 = vsel %vm1017, %v990, 0.0
      %1130 = vadd.xlane.f32.xlu0 %v1129
      %v1131 = vpop.xlane.xlu0 %1130
      %v1132 = vsel %vm1017, %v991, 0.0
      %1133 = vadd.xlane.f32.xlu0 %v1132
      %v1134 = vpop.xlane.xlu0 %1133
      %v1135 = vsel %vm1017, %v992, 0.0
      %1136 = vadd.xlane.f32.xlu0 %v1135
      %v1137 = vpop.xlane.xlu0 %1136
      %v1138 = vsel %vm1017, %v993, 0.0
      %1139 = vadd.xlane.f32.xlu0 %v1138
      %v1140 = vpop.xlane.xlu0 %1139
      %v1141 = vsel %vm1017, %v994, 0.0
      %1142 = vadd.xlane.f32.xlu0 %v1141
      %v1143 = vpop.xlane.xlu0 %1142
      %v1144 = vsel %vm1017, %v995, 0.0
      %1145 = vadd.xlane.f32.xlu0 %v1144
      %v1146 = vpop.xlane.xlu0 %1145
      %v1147 = vsel %vm1017, %v996, 0.0
      %1148 = vadd.xlane.f32.xlu0 %v1147
      %v1149 = vpop.xlane.xlu0 %1148
      %v1150 = vsel %vm1017, %v997, 0.0
      %1151 = vadd.xlane.f32.xlu0 %v1150
      %v1152 = vpop.xlane.xlu0 %1151
      %v1153 = vsel %vm1017, %v998, 0.0
      %1154 = vadd.xlane.f32.xlu0 %v1153
      %v1155 = vpop.xlane.xlu0 %1154
      %v1156 = vsel %vm1017, %v999, 0.0
      %1157 = vadd.xlane.f32.xlu0 %v1156
      %v1158 = vpop.xlane.xlu0 %1157
      %v1159 = vsel %vm1017, %v1000, 0.0
      %1160 = vadd.xlane.f32.xlu0 %v1159
      %v1161 = vpop.xlane.xlu0 %1160
      %v1162 = vsel %vm1017, %v1001, 0.0
      %1163 = vadd.xlane.f32.xlu0 %v1162
      %v1164 = vpop.xlane.xlu0 %1163
      %v1165 = vsel %vm1017, %v1002, 0.0
      %1166 = vadd.xlane.f32.xlu0 %v1165
      %v1167 = vpop.xlane.xlu0 %1166
      %v1168 = vsel %vm1017, %v1003, 0.0
      %1169 = vadd.xlane.f32.xlu0 %v1168
      %v1170 = vpop.xlane.xlu0 %1169
      %v1171 = vsel %vm1017, %v1004, 0.0
      %1172 = vadd.xlane.f32.xlu0 %v1171
      %v1173 = vpop.xlane.xlu0 %1172
      %v1174 = vsel %vm1017, %v1005, 0.0
      %1175 = vadd.xlane.f32.xlu0 %v1174
      %v1176 = vpop.xlane.xlu0 %1175
      %v1177 = vsel %vm1017, %v1006, 0.0
      %1178 = vadd.xlane.f32.xlu0 %v1177
      %v1179 = vpop.xlane.xlu0 %1178
      %v1180 = vsel %vm1017, %v1007, 0.0
      %1181 = vadd.xlane.f32.xlu0 %v1180
      %v1182 = vpop.xlane.xlu0 %1181
      %v1183 = vsel %vm1017, %v1008, 0.0
      %1184 = vadd.xlane.f32.xlu0 %v1183
      %v1185 = vpop.xlane.xlu0 %1184
      %v1186 = vsel %vm1017, %v1009, 0.0
      %1187 = vadd.xlane.f32.xlu0 %v1186
      %v1188 = vpop.xlane.xlu0 %1187
      %v1189 = vsel %vm1017, %v1010, 0.0
      %1190 = vadd.xlane.f32.xlu0 %v1189
      %v1191 = vpop.xlane.xlu0 %1190
      %v1192 = vsel %vm1017, %v1011, 0.0
      %1193 = vadd.xlane.f32.xlu0 %v1192
      %v1194 = vpop.xlane.xlu0 %1193
      %v1195 = vsel %vm1017, %v1012, 0.0
      %1196 = vadd.xlane.f32.xlu0 %v1195
      %v1197 = vpop.xlane.xlu0 %1196
      %v1198 = vsel %vm1017, %v1013, 0.0
      %1199 = vadd.xlane.f32.xlu0 %v1198
      %v1200 = vpop.xlane.xlu0 %1199
      %v1201 = vsel %vm1017, %v1014, 0.0
      %1202 = vadd.xlane.f32.xlu0 %v1201
      %v1203 = vpop.xlane.xlu0 %1202
      %v1204 = vsel %vm1017, %v1015, 0.0
      %1205 = vadd.xlane.f32.xlu0 %v1204
      %v1206 = vpop.xlane.xlu0 %1205
      %v1207 = vsel %vm1017, %v1016, 0.0
      %1208 = vadd.xlane.f32.xlu0 %v1207
      %v1209 = vpop.xlane.xlu0 %1208
      %s1210 = sld [smem:[#allocation2]]
      %v1211 = vstv %s1210
      %v1212 = vadd.f32 %v1020, %v1211
      %v1213 = vadd.f32 %v1023, %v1211
      %v1214 = vadd.f32 %v1026, %v1211
      %v1215 = vadd.f32 %v1029, %v1211
      %v1216 = vadd.f32 %v1032, %v1211
      %v1217 = vadd.f32 %v1035, %v1211
      %v1218 = vadd.f32 %v1038, %v1211
      %v1219 = vadd.f32 %v1041, %v1211
      %v1220 = vadd.f32 %v1044, %v1211
      %v1221 = vadd.f32 %v1047, %v1211
      %v1222 = vadd.f32 %v1050, %v1211
      %v1223 = vadd.f32 %v1053, %v1211
      %v1224 = vadd.f32 %v1056, %v1211
      %v1225 = vadd.f32 %v1059, %v1211
      %v1226 = vadd.f32 %v1062, %v1211
      %v1227 = vadd.f32 %v1065, %v1211
      %v1228 = vadd.f32 %v1068, %v1211
      %v1229 = vadd.f32 %v1071, %v1211
      %v1230 = vadd.f32 %v1074, %v1211
      %v1231 = vadd.f32 %v1077, %v1211
      %v1232 = vadd.f32 %v1080, %v1211
      %v1233 = vadd.f32 %v1083, %v1211
      %v1234 = vadd.f32 %v1086, %v1211
      %v1235 = vadd.f32 %v1089, %v1211
      %v1236 = vadd.f32 %v1092, %v1211
      %v1237 = vadd.f32 %v1095, %v1211
      %v1238 = vadd.f32 %v1098, %v1211
      %v1239 = vadd.f32 %v1101, %v1211
      %v1240 = vadd.f32 %v1104, %v1211
      %v1241 = vadd.f32 %v1107, %v1211
      %v1242 = vadd.f32 %v1110, %v1211
      %v1243 = vadd.f32 %v1113, %v1211
      %v1244 = vadd.f32 %v1116, %v1211
      %v1245 = vadd.f32 %v1119, %v1211
      %v1246 = vadd.f32 %v1122, %v1211
      %v1247 = vadd.f32 %v1125, %v1211
      %v1248 = vadd.f32 %v1128, %v1211
      %v1249 = vadd.f32 %v1131, %v1211
      %v1250 = vadd.f32 %v1134, %v1211
      %v1251 = vadd.f32 %v1137, %v1211
      %v1252 = vadd.f32 %v1140, %v1211
      %v1253 = vadd.f32 %v1143, %v1211
      %v1254 = vadd.f32 %v1146, %v1211
      %v1255 = vadd.f32 %v1149, %v1211
      %v1256 = vadd.f32 %v1152, %v1211
      %v1257 = vadd.f32 %v1155, %v1211
      %v1258 = vadd.f32 %v1158, %v1211
      %v1259 = vadd.f32 %v1161, %v1211
      %v1260 = vadd.f32 %v1164, %v1211
      %v1261 = vadd.f32 %v1167, %v1211
      %v1262 = vadd.f32 %v1170, %v1211
      %v1263 = vadd.f32 %v1173, %v1211
      %v1264 = vadd.f32 %v1176, %v1211
      %v1265 = vadd.f32 %v1179, %v1211
      %v1266 = vadd.f32 %v1182, %v1211
      %v1267 = vadd.f32 %v1185, %v1211
      %v1268 = vadd.f32 %v1188, %v1211
      %v1269 = vadd.f32 %v1191, %v1211
      %v1270 = vadd.f32 %v1194, %v1211
      %v1271 = vadd.f32 %v1197, %v1211
      %v1272 = vadd.f32 %v1200, %v1211
      %v1273 = vadd.f32 %v1203, %v1211
      %v1274 = vadd.f32 %v1206, %v1211
      %v1275 = vadd.f32 %v1209, %v1211
      %vm1276 = vcmask 7168
      %1277 = vst.msk [vmem:[%s227] sm:$0xff] %vm1276, %v1212
      %1278 = vst.msk [vmem:[%s227 + $0x8] sm:$0xff] %vm1276, %v1213
      %1279 = vst.msk [vmem:[%s227 + $0x10] sm:$0xff] %vm1276, %v1214
      %1280 = vst.msk [vmem:[%s227 + $0x18] sm:$0xff] %vm1276, %v1215
      %1281 = vst.msk [vmem:[%s227 + $0x20] sm:$0xff] %vm1276, %v1216
      %1282 = vst.msk [vmem:[%s227 + $0x28] sm:$0xff] %vm1276, %v1217
      %1283 = vst.msk [vmem:[%s227 + $0x30] sm:$0xff] %vm1276, %v1218
      %1284 = vst.msk [vmem:[%s227 + $0x38] sm:$0xff] %vm1276, %v1219
      %1285 = vst.msk [vmem:[%s227 + $0x40] sm:$0xff] %vm1276, %v1220
      %1286 = vst.msk [vmem:[%s227 + $0x48] sm:$0xff] %vm1276, %v1221
      %1287 = vst.msk [vmem:[%s227 + $0x50] sm:$0xff] %vm1276, %v1222
      %1288 = vst.msk [vmem:[%s227 + $0x58] sm:$0xff] %vm1276, %v1223
      %1289 = vst.msk [vmem:[%s227 + $0x60] sm:$0xff] %vm1276, %v1224
      %1290 = vst.msk [vmem:[%s227 + $0x68] sm:$0xff] %vm1276, %v1225
      %1291 = vst.msk [vmem:[%s227 + $0x70] sm:$0xff] %vm1276, %v1226
      %1292 = vst.msk [vmem:[%s227 + $0x78] sm:$0xff] %vm1276, %v1227
      %1293 = vst.msk [vmem:[%s227 + $0x80] sm:$0xff] %vm1276, %v1228
      %1294 = vst.msk [vmem:[%s227 + $0x88] sm:$0xff] %vm1276, %v1229
      %1295 = vst.msk [vmem:[%s227 + $0x90] sm:$0xff] %vm1276, %v1230
      %1296 = vst.msk [vmem:[%s227 + $0x98] sm:$0xff] %vm1276, %v1231
      %1297 = vst.msk [vmem:[%s227 + $0xa0] sm:$0xff] %vm1276, %v1232
      %1298 = vst.msk [vmem:[%s227 + $0xa8] sm:$0xff] %vm1276, %v1233
      %1299 = vst.msk [vmem:[%s227 + $0xb0] sm:$0xff] %vm1276, %v1234
      %1300 = vst.msk [vmem:[%s227 + $0xb8] sm:$0xff] %vm1276, %v1235
      %1301 = vst.msk [vmem:[%s227 + $0xc0] sm:$0xff] %vm1276, %v1236
      %1302 = vst.msk [vmem:[%s227 + $0xc8] sm:$0xff] %vm1276, %v1237
      %1303 = vst.msk [vmem:[%s227 + $0xd0] sm:$0xff] %vm1276, %v1238
      %1304 = vst.msk [vmem:[%s227 + $0xd8] sm:$0xff] %vm1276, %v1239
      %1305 = vst.msk [vmem:[%s227 + $0xe0] sm:$0xff] %vm1276, %v1240
      %1306 = vst.msk [vmem:[%s227 + $0xe8] sm:$0xff] %vm1276, %v1241
      %1307 = vst.msk [vmem:[%s227 + $0xf0] sm:$0xff] %vm1276, %v1242
      %1308 = vst.msk [vmem:[%s227 + $0xf8] sm:$0xff] %vm1276, %v1243
      %1309 = vst.msk [vmem:[%s227 + $0x100] sm:$0xff] %vm1276, %v1244
      %1310 = vst.msk [vmem:[%s227 + $0x108] sm:$0xff] %vm1276, %v1245
      %1311 = vst.msk [vmem:[%s227 + $0x110] sm:$0xff] %vm1276, %v1246
      %1312 = vst.msk [vmem:[%s227 + $0x118] sm:$0xff] %vm1276, %v1247
      %1313 = vst.msk [vmem:[%s227 + $0x120] sm:$0xff] %vm1276, %v1248
      %1314 = vst.msk [vmem:[%s227 + $0x128] sm:$0xff] %vm1276, %v1249
      %1315 = vst.msk [vmem:[%s227 + $0x130] sm:$0xff] %vm1276, %v1250
      %1316 = vst.msk [vmem:[%s227 + $0x138] sm:$0xff] %vm1276, %v1251
      %1317 = vst.msk [vmem:[%s227 + $0x140] sm:$0xff] %vm1276, %v1252
      %1318 = vst.msk [vmem:[%s227 + $0x148] sm:$0xff] %vm1276, %v1253
      %1319 = vst.msk [vmem:[%s227 + $0x150] sm:$0xff] %vm1276, %v1254
      %1320 = vst.msk [vmem:[%s227 + $0x158] sm:$0xff] %vm1276, %v1255
      %1321 = vst.msk [vmem:[%s227 + $0x160] sm:$0xff] %vm1276, %v1256
      %1322 = vst.msk [vmem:[%s227 + $0x168] sm:$0xff] %vm1276, %v1257
      %1323 = vst.msk [vmem:[%s227 + $0x170] sm:$0xff] %vm1276, %v1258
      %1324 = vst.msk [vmem:[%s227 + $0x178] sm:$0xff] %vm1276, %v1259
      %1325 = vst.msk [vmem:[%s227 + $0x180] sm:$0xff] %vm1276, %v1260
      %1326 = vst.msk [vmem:[%s227 + $0x188] sm:$0xff] %vm1276, %v1261
      %1327 = vst.msk [vmem:[%s227 + $0x190] sm:$0xff] %vm1276, %v1262
      %1328 = vst.msk [vmem:[%s227 + $0x198] sm:$0xff] %vm1276, %v1263
      %1329 = vst.msk [vmem:[%s227 + $0x1a0] sm:$0xff] %vm1276, %v1264
      %1330 = vst.msk [vmem:[%s227 + $0x1a8] sm:$0xff] %vm1276, %v1265
      %1331 = vst.msk [vmem:[%s227 + $0x1b0] sm:$0xff] %vm1276, %v1266
      %1332 = vst.msk [vmem:[%s227 + $0x1b8] sm:$0xff] %vm1276, %v1267
      %1333 = vst.msk [vmem:[%s227 + $0x1c0] sm:$0xff] %vm1276, %v1268
      %1334 = vst.msk [vmem:[%s227 + $0x1c8] sm:$0xff] %vm1276, %v1269
      %1335 = vst.msk [vmem:[%s227 + $0x1d0] sm:$0xff] %vm1276, %v1270
      %1336 = vst.msk [vmem:[%s227 + $0x1d8] sm:$0xff] %vm1276, %v1271
      %1337 = vst.msk [vmem:[%s227 + $0x1e0] sm:$0xff] %vm1276, %v1272
      %1338 = vst.msk [vmem:[%s227 + $0x1e8] sm:$0xff] %vm1276, %v1273
      %1339 = vst.msk [vmem:[%s227 + $0x1f0] sm:$0xff] %vm1276, %v1274
      %1340 = vst.msk [vmem:[%s227 + $0x1f8] sm:$0xff] %vm1276, %v1275
      %s1341 = smul.u32 64, %s17
      %p1342 = scmp.lt.s32.totalorder %s1341, 191
      %s1343 = scalar_select %p1342, %s1341, 191
      %s1344 = smul.addr %s1343, 8
      %s1345 = scalar_lea.vmem %s5, %s1344
      // Predicated region
      $region41: #{tpu_custom_call.1} parent=39 // pred_check
        %p1346 = pneg %p145
      $region42: #{tpu_custom_call.1} parent=39 // pred_check_branch
        %1348 = sbr.rel (%p1346) target = $region44
      $region43: #{tpu_custom_call.1} parent=39 // pred_region
        %s1349 = smul.u32 64, %s17
      $region44: #{tpu_custom_call.1} parent=39 // pred_fallthru
        _
    $region40: #{tpu_custom_call.1} parent=5 // pred_fallthru
      _
    %p1350 = scmp.le.s32.totalorder 2, %s12
    // Predicated region
    $region45: #{tpu_custom_call.1} parent=5 // pred_check
      %p1351 = pneg %p1350
    $region46: #{tpu_custom_call.1} parent=5 // pred_check_branch
      %1353 = sbr.rel (%p1351) target = $region48
    $region47: #{tpu_custom_call.1} parent=5 // pred_region
      %s1354 = ssub.s32 %s12, 2
      // Predicated region
      $region49: #{tpu_custom_call.1} parent=47 // pred_check
        %p1355 = pneg %p151
      $region50: #{tpu_custom_call.1} parent=47 // pred_check_branch
        %1357 = sbr.rel (%p1355) target = $region52
      $region51: #{tpu_custom_call.1} parent=47 // pred_region
        %s1358 = smul.u32 64, %s18
        %p1359 = scmp.lt.s32.totalorder %s1358, 191
        %s1360 = scalar_select %p1359, %s1358, 191
        %s1361 = smul.addr %s1360, 8
        %s1362 = scalar_lea.vmem %s5, %s1361
      $region52: #{tpu_custom_call.1} parent=47 // pred_fallthru
        _
    $region48: #{tpu_custom_call.1} parent=5 // pred_fallthru
      _
  $region6: #{tpu_custom_call.1} parent=0 // loop_footer
    %s16 = sadd.s32 1, %s12
  $region7: #{tpu_custom_call.1} parent=0 // loop_footer_branch
    %11 = sbr.rel target = $region3
  $region8: #{tpu_custom_call.1} parent=0 // loop_exit
    _

</llo_original>
